<compile_context>
chip_gen: v7x
topology: tpu7x:2x2x1
jax: 0.10.0
libtpu: 0.0.40
codegen_flags: <defaults>
</compile_context>

<pallas_src>
import functools

import jax
import jax.numpy as jnp
from jax.experimental import pallas as pl
from jax.experimental.pallas import tpu as pltpu


# ----------------------------------------------------------------------------
# Small helpers (pure Python, used only at trace/plan time).
# ----------------------------------------------------------------------------
def _round_up(x, m):
    return ((x + m - 1) // m) * m


def _cdiv(a, b):
    return -(-a // b)


def _pad_dim(d, lane):
    # 256-alignment only pays once the dim exceeds one 128-lane tile.
    return _round_up(d, lane) if d > 128 else _round_up(d, 128)


def _default_lane():
    # v6e / v7x MXUs are 2x256^2 -> prefer 256-aligned feature dims there;
    # v5e (4x128^2) keeps 128.  Mis-detection only costs padding, never math.
    try:
        kind = jax.devices()[0].device_kind.lower()
    except Exception:
        return 128
    return 256 if ("v6" in kind or "v7" in kind) else 128


@functools.lru_cache(maxsize=1)
def _vmem_capacity_bytes():
    try:
        cap = int(pltpu.get_tpu_info().vmem_capacity_bytes)
        if cap > 0:
            return cap
    except Exception:
        pass
    return 64 * 1024 * 1024  # conservative (v7x-class) fallback


def _buffered_supported():
    if not hasattr(pl, "Buffered"):
        return False
    try:
        pl.BlockSpec((8, 128), lambda i: (i, 0), pipeline_mode=pl.Buffered(1))
        return True
    except TypeError:
        return False


_SUPPORTS_BUFFERED = _buffered_supported()


def _spec(shape, index_map, buffers=None):
    """BlockSpec with an optional buffer-count override (single-buffer the
    operands whose block index is constant across the whole grid)."""
    if buffers is not None and _SUPPORTS_BUFFERED:
        try:
            return pl.BlockSpec(shape, index_map,
                                pipeline_mode=pl.Buffered(buffers))
        except TypeError:
            pass
    return pl.BlockSpec(shape, index_map)


# ----------------------------------------------------------------------------
# Kernel: grid = (batch tiles [parallel], hidden chunks [arbitrary]).
# ----------------------------------------------------------------------------
def mlp_kernel(x_ref, w1_ref, b1_ref, w2_ref, b2_ref, o_ref, acc_ref):
    k = pl.program_id(1)

    @pl.when(k == 0)
    def _():
        acc_ref[...] = jnp.zeros_like(acc_ref)

    # fc1 on a hidden chunk: [TM, Ip] @ [Ip, tH] with f32 MXU accumulation.
    h = jnp.dot(x_ref[...], w1_ref[...], preferred_element_type=jnp.float32)
    # Bias + ReLU kept in f32 (exact; avoids bf16 VALU path on v5e).
    h = jnp.maximum(h + b1_ref[...], 0.0)
    # fc2 partial product for this hidden chunk; narrow only at the MXU input.
    acc_ref[...] += jnp.dot(h.astype(w2_ref.dtype), w2_ref[...],
                            preferred_element_type=jnp.float32)

    @pl.when(k == pl.num_programs(1) - 1)
    def _():
        o_ref[...] = (acc_ref[...] + b2_ref[...]).astype(o_ref.dtype)


# ----------------------------------------------------------------------------
# One-time parameter preparation (hoisted out of the per-forward hot path).
# ----------------------------------------------------------------------------
def prepare_params(w1, b1, w2, b2, *, param_dtype=jnp.float32, lane=None):
    """Transpose PyTorch-layout weights ([out, in] -> [in, out]), pad feature
    dims to lane-dense multiples (128, or 256 on v6e/v7x for large dims), and
    cast weights to `param_dtype`.  Biases stay f32 (exact epilogue).
    Zero padding keeps the math identical to the unpadded MLP."""
    if lane is None:
        lane = _default_lane()
    H, I = w1.shape
    O = w2.shape[0]
    Ip, Hp, Op = _pad_dim(I, lane), _pad_dim(H, lane), _pad_dim(O, lane)

    w1_t = jnp.zeros((Ip, Hp), param_dtype).at[:I, :H].set(
        jnp.transpose(w1).astype(param_dtype))
    w2_t = jnp.zeros((Hp, Op), param_dtype).at[:H, :O].set(
        jnp.transpose(w2).astype(param_dtype))
    b1_p = jnp.zeros((1, Hp), jnp.float32).at[0, :H].set(b1.astype(jnp.float32))
    b2_p = jnp.zeros((1, Op), jnp.float32).at[0, :O].set(b2.astype(jnp.float32))
    return (w1_t, b1_p, w2_t, b2_p), (I, H, O)


# ----------------------------------------------------------------------------
# Forward pass.
# ----------------------------------------------------------------------------
@functools.partial(jax.jit,
                   static_argnames=("out_features", "tm", "th", "vmem_limit"))
def _mlp_call(x, w1_t, b1_p, w2_t, b2_p, *, out_features, tm, th, vmem_limit):
    B, I = x.shape
    Ip, Hp = w1_t.shape
    Op = w2_t.shape[1]
    assert Hp % th == 0
    compute_dtype = w1_t.dtype
    out_dtype = x.dtype

    n_bt = _cdiv(B, tm)
    Bp = n_bt * tm
    n_k = Hp // th

    # Aligned fast path: skip the pad copy entirely when nothing changes.
    if Bp == B and Ip == I and x.dtype == compute_dtype:
        xp = x
    else:
        xp = jnp.pad(x.astype(compute_dtype), ((0, Bp - B), (0, Ip - I)))

    bpe = jnp.dtype(compute_dtype).itemsize
    out_bpe = jnp.dtype(out_dtype).itemsize
    flops = 2 * Bp * (Ip * Hp + Hp * Op)
    bytes_accessed = (Bp * Ip * bpe
                      + (w1_t.size + w2_t.size) * bpe
                      + (b1_p.size + b2_p.size) * 4
                      + Bp * Op * out_bpe)
    cost = pl.CostEstimate(flops=flops, transcendentals=0,
                           bytes_accessed=bytes_accessed)

    # Weights/b1 are streamed over the hidden-chunk axis (double-buffered);
    # when a single chunk covers Hp their index is constant -> 1 buffer.
    w_buffers = 1 if n_k == 1 else None

    out_p = pl.pallas_call(
        mlp_kernel,
        out_shape=jax.ShapeDtypeStruct((Bp, Op), out_dtype),
        grid_spec=pltpu.PrefetchScalarGridSpec(
            num_scalar_prefetch=0,
            grid=(n_bt, n_k),
            in_specs=[
                _spec((tm, Ip), lambda i, k: (i, 0)),                 # x tile
                _spec((Ip, th), lambda i, k: (0, k), buffers=w_buffers),  # w1
                _spec((1, th), lambda i, k: (0, k), buffers=w_buffers),   # b1
                _spec((th, Op), lambda i, k: (k, 0), buffers=w_buffers),  # w2
                _spec((1, Op), lambda i, k: (0, 0), buffers=1),           # b2
            ],
            out_specs=pl.BlockSpec((tm, Op), lambda i, k: (i, 0)),
            scratch_shapes=[pltpu.VMEM((tm, Op), jnp.float32)],
        ),
        compiler_params=pltpu.CompilerParams(
            dimension_semantics=("parallel", "arbitrary"),
            vmem_limit_bytes=vmem_limit,
        ),
        cost_estimate=cost,
    )(xp, w1_t, b1_p, w2_t, b2_p)

    if Bp == B and Op == out_features:
        return out_p
    return out_p[:B, :out_features]


def mlp_forward(x, w1_t, b1_p, w2_t, b2_p, *, out_features, block_m=None,
                hidden_chunk=None):
    """x: [B, I]. Padded/transposed params from prepare_params."""
    B, I = x.shape
    Ip, Hp = w1_t.shape
    Op = w2_t.shape[1]
    bpe = jnp.dtype(w1_t.dtype).itemsize
    out_bpe = jnp.dtype(x.dtype).itemsize

    cap = _vmem_capacity_bytes()
    budget = int(0.70 * cap)          # tile-fitting budget (headroom for scratch)

    if block_m is None:
        # Bigger batch tiles on the 128 MiB-class chips / bf16 weights.
        block_m = 1024 if (bpe <= 2 and cap >= (96 << 20)) else 512

    # --- balanced batch tiles; guarantee >=2 tiles once B is large enough so
    #     v7x's second TensorCore gets work (harmless on single-TC chips).
    n_bt = _cdiv(B, block_m)
    if n_bt == 1 and B >= 256:
        n_bt = 2
    tm = min(_round_up(_cdiv(B, n_bt), 8), _round_up(B, 8))

    # --- hidden chunk size: largest 128-multiple divisor of Hp that fits the
    #     VMEM budget (falls back to streaming 128-wide chunks of w1/w2).
    def footprint(th):
        nk = Hp // th
        wbuf = (1 if (nk == 1 and _SUPPORTS_BUFFERED) else 2)
        return (2 * tm * Ip * bpe            # x tile (double-buffered)
                + wbuf * Ip * th * bpe       # w1 chunk
                + wbuf * th * 4              # b1 chunk (f32)
                + wbuf * th * Op * bpe       # w2 chunk
                + Op * 4                     # b2 (resident, single buffer)
                + 2 * tm * Op * out_bpe      # out tile (double-buffered)
                + tm * Op * 4                # f32 accumulator scratch
                + tm * th * 4)               # live fc1 intermediate

    if hidden_chunk is not None:
        assert hidden_chunk % 128 == 0 and Hp % hidden_chunk == 0
        th = hidden_chunk
    else:
        th = Hp
        for cand in range(Hp, 0, -128):
            if Hp % cand == 0:
                th = cand
                if footprint(cand) <= budget:
                    break

    vmem_limit = int(min(cap, max(32 << 20, int(0.90 * cap),
                                  footprint(th) + (8 << 20))))

    return _mlp_call(x, w1_t, b1_p, w2_t, b2_p, out_features=out_features,
                     tm=int(tm), th=int(th), vmem_limit=vmem_limit)


# ----------------------------------------------------------------------------
# Self-test.
# ----------------------------------------------------------------------------
if __name__ == "__main__":
    # Shapes consistent with MLP(input_size, hidden_size, output_size).
    batch, input_size, hidden_size, output_size = 8, 32, 64, 16

    key = jax.random.PRNGKey(0)
    kx, k1, k2, k3, k4 = jax.random.split(key, 5)

    bound1 = 1.0 / (input_size ** 0.5)
    bound2 = 1.0 / (hidden_size ** 0.5)
    w1 = jax.random.uniform(k1, (hidden_size, input_size), jnp.float32, -bound1, bound1)
    b1 = jax.random.uniform(k2, (hidden_size,), jnp.float32, -bound1, bound1)
    w2 = jax.random.uniform(k3, (output_size, hidden_size), jnp.float32, -bound2, bound2)
    b2 = jax.random.uniform(k4, (output_size,), jnp.float32, -bound2, bound2)
    x = jax.random.normal(kx, (batch, input_size), jnp.float32)

    # Pure-JAX reference (same semantics as the torch forward).
    ref = jnp.maximum(x @ w1.T + b1, 0.0) @ w2.T + b2

    # ---- f32 path: exact vs reference ----
    params_f32, (_, _, O) = prepare_params(w1, b1, w2, b2, param_dtype=jnp.float32)
    out_f32 = jax.block_until_ready(mlp_forward(x, *params_f32, out_features=O))
    assert out_f32.shape == (batch, output_size)
    assert jnp.allclose(out_f32, ref, atol=1e-5, rtol=1e-5)

    # ---- bf16 path: bf16 weights/activations, f32 accumulation ----
    params_bf16, _ = prepare_params(w1, b1, w2, b2, param_dtype=jnp.bfloat16)
    out_bf16 = jax.block_until_ready(mlp_forward(x, *params_bf16, out_features=O))
    assert out_bf16.shape == (batch, output_size)
    assert jnp.allclose(out_bf16, ref, atol=5e-2, rtol=5e-2)

    # ---- chunked-hidden + padded-batch path (forces the accumulator loop) ----
    vB, vI, vH, vO = 10, 48, 512, 24
    kk = jax.random.split(jax.random.PRNGKey(1), 5)
    vb1 = 1.0 / (vI ** 0.5)
    vb2 = 1.0 / (vH ** 0.5)
    vw1 = jax.random.uniform(kk[1], (vH, vI), jnp.float32, -vb1, vb1)
    vbi1 = jax.random.uniform(kk[2], (vH,), jnp.float32, -vb1, vb1)
    vw2 = jax.random.uniform(kk[3], (vO, vH), jnp.float32, -vb2, vb2)
    vbi2 = jax.random.uniform(kk[4], (vO,), jnp.float32, -vb2, vb2)
    xv = jax.random.normal(kk[0], (vB, vI), jnp.float32)
    ref_v = jnp.maximum(xv @ vw1.T + vbi1, 0.0) @ vw2.T + vbi2

    pv, (_, _, vOf) = prepare_params(vw1, vbi1, vw2, vbi2, param_dtype=jnp.float32)
    out_v = jax.block_until_ready(
        mlp_forward(xv, *pv, out_features=vOf, hidden_chunk=128))
    assert out_v.shape == (vB, vO)
    assert jnp.allclose(out_v, ref_v, atol=1e-4, rtol=1e-4)

    print("KERNEL_OK")
</pallas_src>

<mosaic_0001>
module attributes {stable_mosaic.version = 11 : i64} {
  func.func @mlp_kernel(%arg0: i32, %arg1: i32, %arg2: memref<8x128xf32, #tpu.memory_space<vmem>>, %arg3: memref<128x128xf32, #tpu.memory_space<vmem>>, %arg4: memref<1x128xf32, #tpu.memory_space<vmem>>, %arg5: memref<128x128xf32, #tpu.memory_space<vmem>>, %arg6: memref<1x128xf32, #tpu.memory_space<vmem>>, %arg7: memref<8x128xf32, #tpu.memory_space<vmem>>, %arg8: memref<8x128xf32, #tpu.memory_space<vmem>>) attributes {dimension_semantics = [#tpu.dimension_semantics<parallel>, #tpu.dimension_semantics<arbitrary>], iteration_bounds = array<i64: 1, 1>, scalar_prefetch = 0 : i64, scratch_operands = 1 : i64, tpu.core_type = #tpu.core_type<tc>, window_params = [{transform_indices = @transform_0, window_bounds = array<i64: 8, 128>}, {pipeline_mode = #tpu.pipeline_mode<synchronous>, transform_indices = @transform_1, window_bounds = array<i64: 128, 128>}, {pipeline_mode = #tpu.pipeline_mode<synchronous>, transform_indices = @transform_2, window_bounds = array<i64: 1, 128>}, {pipeline_mode = #tpu.pipeline_mode<synchronous>, transform_indices = @transform_3, window_bounds = array<i64: 128, 128>}, {pipeline_mode = #tpu.pipeline_mode<synchronous>, transform_indices = @transform_4, window_bounds = array<i64: 1, 128>}, {transform_indices = @transform_5, window_bounds = array<i64: 8, 128>}]} {
    %c0_i32 = arith.constant 0 : i32
    %0 = arith.cmpi eq, %arg1, %c0_i32 : i32
    %1 = arith.extui %0 : i1 to i32
    %c0_i32_0 = arith.constant 0 : i32
    %2 = arith.cmpi ne, %1, %c0_i32_0 : i32
    scf.if %2 {
      %cst_16 = arith.constant 0.000000e+00 : f32
      %19 = vector.broadcast %cst_16 : f32 to vector<8x128xf32>
      %c0_17 = arith.constant 0 : index
      %c0_18 = arith.constant 0 : index
      %20 = vector.load %arg8[%c0_17, %c0_18] : memref<8x128xf32, #tpu.memory_space<vmem>>, vector<8x128xf32>
      tpu.vector_store %arg8[%c0_17, %c0_18], %19 {strides = array<i32>} : memref<8x128xf32, #tpu.memory_space<vmem>>, vector<8x128xf32>,
    } else {
    }
    %c0 = arith.constant 0 : index
    %c0_1 = arith.constant 0 : index
    %3 = vector.load %arg2[%c0, %c0_1] : memref<8x128xf32, #tpu.memory_space<vmem>>, vector<8x128xf32>
    %c0_2 = arith.constant 0 : index
    %c0_3 = arith.constant 0 : index
    %4 = vector.load %arg3[%c0_2, %c0_3] : memref<128x128xf32, #tpu.memory_space<vmem>>, vector<128x128xf32>
    %cst = arith.constant dense<0.000000e+00> : vector<8x128xf32>
    %5 = tpu.matmul %3, %4, %cst {dimension_numbers = #tpu.dot_dimension_numbers<[1], [0], [0], [1], [0, 0, 1, 1], [], []>} : vector<8x128xf32>, vector<128x128xf32>, vector<8x128xf32> -> vector<8x128xf32>
    %c0_4 = arith.constant 0 : index
    %c0_5 = arith.constant 0 : index
    %6 = vector.load %arg4[%c0_4, %c0_5] : memref<1x128xf32, #tpu.memory_space<vmem>>, vector<1x128xf32>
    %7 = vector.broadcast %6 : vector<1x128xf32> to vector<8x128xf32>
    %8 = arith.addf %5, %7 : vector<8x128xf32>
    %cst_6 = arith.constant 0.000000e+00 : f32
    %9 = vector.broadcast %cst_6 : f32 to vector<8x128xf32>
    %10 = arith.maximumf %8, %9 : vector<8x128xf32>
    %c0_7 = arith.constant 0 : index
    %c0_8 = arith.constant 0 : index
    %11 = vector.load %arg8[%c0_7, %c0_8] : memref<8x128xf32, #tpu.memory_space<vmem>>, vector<8x128xf32>
    %c0_9 = arith.constant 0 : index
    %c0_10 = arith.constant 0 : index
    %12 = vector.load %arg5[%c0_9, %c0_10] : memref<128x128xf32, #tpu.memory_space<vmem>>, vector<128x128xf32>
    %cst_11 = arith.constant dense<0.000000e+00> : vector<8x128xf32>
    %13 = tpu.matmul %10, %12, %cst_11 {dimension_numbers = #tpu.dot_dimension_numbers<[1], [0], [0], [1], [0, 0, 1, 1], [], []>} : vector<8x128xf32>, vector<128x128xf32>, vector<8x128xf32> -> vector<8x128xf32>
    %14 = arith.addf %11, %13 : vector<8x128xf32>
    %c0_12 = arith.constant 0 : index
    %c0_13 = arith.constant 0 : index
    %15 = vector.load %arg8[%c0_12, %c0_13] : memref<8x128xf32, #tpu.memory_space<vmem>>, vector<8x128xf32>
    tpu.vector_store %arg8[%c0_12, %c0_13], %14 {strides = array<i32>} : memref<8x128xf32, #tpu.memory_space<vmem>>, vector<8x128xf32>,
    %c0_i32_14 = arith.constant 0 : i32
    %16 = arith.cmpi eq, %arg1, %c0_i32_14 : i32
    %17 = arith.extui %16 : i1 to i32
    %c0_i32_15 = arith.constant 0 : i32
    %18 = arith.cmpi ne, %17, %c0_i32_15 : i32
    scf.if %18 {
      %c0_16 = arith.constant 0 : index
      %c0_17 = arith.constant 0 : index
      %19 = vector.load %arg8[%c0_16, %c0_17] : memref<8x128xf32, #tpu.memory_space<vmem>>, vector<8x128xf32>
      %c0_18 = arith.constant 0 : index
      %c0_19 = arith.constant 0 : index
      %20 = vector.load %arg6[%c0_18, %c0_19] : memref<1x128xf32, #tpu.memory_space<vmem>>, vector<1x128xf32>
      %21 = vector.broadcast %20 : vector<1x128xf32> to vector<8x128xf32>
      %22 = arith.addf %19, %21 : vector<8x128xf32>
      %c0_20 = arith.constant 0 : index
      %c0_21 = arith.constant 0 : index
      %23 = vector.load %arg7[%c0_20, %c0_21] : memref<8x128xf32, #tpu.memory_space<vmem>>, vector<8x128xf32>
      tpu.vector_store %arg7[%c0_20, %c0_21], %22 {strides = array<i32>} : memref<8x128xf32, #tpu.memory_space<vmem>>, vector<8x128xf32>,
    } else {
    }
    return
  }
  func.func @transform_0(%arg0: i32, %arg1: i32) -> (i32, i32) {
    %c0_i32 = arith.constant 0 : i32
    %c0_i32_0 = arith.constant 0 : i32
    return %arg0, %c0_i32 : i32, i32
  }
  func.func @transform_1(%arg0: i32, %arg1: i32) -> (i32, i32) {
    %c0_i32 = arith.constant 0 : i32
    %c0_i32_0 = arith.constant 0 : i32
    return %c0_i32, %arg1 : i32, i32
  }
  func.func @transform_2(%arg0: i32, %arg1: i32) -> (i32, i32) {
    %c0_i32 = arith.constant 0 : i32
    %c0_i32_0 = arith.constant 0 : i32
    return %c0_i32, %arg1 : i32, i32
  }
  func.func @transform_3(%arg0: i32, %arg1: i32) -> (i32, i32) {
    %c0_i32 = arith.constant 0 : i32
    %c0_i32_0 = arith.constant 0 : i32
    return %arg1, %c0_i32 : i32, i32
  }
  func.func @transform_4(%arg0: i32, %arg1: i32) -> (i32, i32) {
    %c0_i32 = arith.constant 0 : i32
    %c0_i32_0 = arith.constant 0 : i32
    %c0_i32_1 = arith.constant 0 : i32
    return %c0_i32, %c0_i32_0 : i32, i32
  }
  func.func @transform_5(%arg0: i32, %arg1: i32) -> (i32, i32) {
    %c0_i32 = arith.constant 0 : i32
    %c0_i32_0 = arith.constant 0 : i32
    return %arg0, %c0_i32 : i32, i32
  }
}

</mosaic_0001>

<llo_original>
// kernel: _mlp_call.1
$region0: #{_mlp_call.1}
  #allocation0 [shape = 'u32[]', space=smem, size = 0x4, offset = 0x4, fixed_abs, tag = 'smem constant byte address 0x4 - core index']
  #allocation1 [shape = 'u32[144,128]{1,0:T(1,128)}', space=vmem, size = 0x12000, scoped, tag = 'internal scratch']
  #allocation2 [shape = 'f32[8,128]{1,0:T(8,128)}', space=vmem, size = 0x1000, scoped, tag = 'scratch operand']
  %s0 = inlined_call_operand.vmem [shape: f32[8,128], index: 0, kind: input, shape index: {}]
  %s1 = inlined_call_operand.hbm [shape: f32[128,128], index: 1, kind: input, shape index: {}]
  %s2 = inlined_call_operand.vmem [shape: f32[1,128], index: 2, kind: input, shape index: {}]
  %s3 = inlined_call_operand.hbm [shape: f32[128,128], index: 3, kind: input, shape index: {}]
  %s4 = inlined_call_operand.vmem [shape: f32[1,128], index: 4, kind: input, shape index: {}]
  %s5 = inlined_call_operand.hbm [shape: f32[8,128], index: 5, kind: output, shape index: {}]
  %s6 = sld [smem:[#allocation0]]
  $region46: #{_mlp_call.1} parent=0
    _
  %s8 = ssub.s32 1, %s6
  %s9 = scalar_select 0, %s8, %s6
  $region1: #{_mlp_call.1} parent=0
    #allocation3 [shape = 'u8[65536]{0}', space=vmem, size = 0x10000, scoped, tag = 'input window, operand 1, single buffered']
    #allocation4 [shape = 's32[1]{0}', space=sflag, size = 0x4, scoped, tag = 'scoped memory for _mlp_call.1']
    #allocation5 [shape = 's32[1]{0}', space=sflag, size = 0x4, scoped, tag = 'scoped memory for _mlp_call.1']
    #allocation6 [shape = 'u8[65536]{0}', space=vmem, size = 0x10000, scoped, tag = 'input window, operand 3, single buffered']
    #allocation7 [shape = 's32[1]{0}', space=sflag, size = 0x4, scoped, tag = 'scoped memory for _mlp_call.1']
    #allocation8 [shape = 'u8[4096]{0}', space=vmem, size = 0x1000, scoped, tag = 'output window, operand 0, single buffered']
    %10 = vsyncpa [#allocation4], 0
    %11 = vsyncpa [#allocation7], 0
    %12 = vsyncpa [#allocation5], 0
    // Predicated region
    $region2: #{_mlp_call.1} parent=1 // pred_check
      _
    $region3: #{_mlp_call.1} parent=1 // pred_check_branch
      %14 = sbr.rel (0) target = $region5
    $region4: #{_mlp_call.1} parent=1 // pred_region
      _
    $region5: #{_mlp_call.1} parent=1 // pred_fallthru
      _
    // Predicated region
    $region6: #{_mlp_call.1} parent=1 // pred_check
      _
    $region7: #{_mlp_call.1} parent=1 // pred_check_branch
      %16 = sbr.rel (0) target = $region9
    $region8: #{_mlp_call.1} parent=1 // pred_region
      %s18 = ssub.s32 2048, 2048
      %19 = vsyncadd [#allocation4], %s18
      %s20 = sshll.u32 [#allocation3], 4
      %s21 = int_to_ptr.vmem [resolvable:$true] %s20
      %26 = dma.hbm_to_vmem [thread:$0]  %s1, 2048, %s21, [#allocation4], 128, 128, 8
    $region9: #{_mlp_call.1} parent=1 // pred_fallthru
      _
    // Predicated region
    $region10: #{_mlp_call.1} parent=1 // pred_check
      _
    $region11: #{_mlp_call.1} parent=1 // pred_check_branch
      %28 = sbr.rel (0) target = $region13
    $region12: #{_mlp_call.1} parent=1 // pred_region
      _
    $region13: #{_mlp_call.1} parent=1 // pred_fallthru
      _
    // Predicated region
    $region14: #{_mlp_call.1} parent=1 // pred_check
      _
    $region15: #{_mlp_call.1} parent=1 // pred_check_branch
      %30 = sbr.rel (0) target = $region17
    $region16: #{_mlp_call.1} parent=1 // pred_region
      %s32 = ssub.s32 2048, 2048
      %33 = vsyncadd [#allocation7], %s32
      %s34 = sshll.u32 [#allocation6], 4
      %s35 = int_to_ptr.vmem [resolvable:$true] %s34
      %40 = dma.hbm_to_vmem [thread:$0]  %s3, 2048, %s35, [#allocation7], 128, 128, 8
    $region17: #{_mlp_call.1} parent=1 // pred_fallthru
      _
    // Predicated region
    $region18: #{_mlp_call.1} parent=1 // pred_check
      _
    $region19: #{_mlp_call.1} parent=1 // pred_check_branch
      %42 = sbr.rel (0) target = $region21
    $region20: #{_mlp_call.1} parent=1 // pred_region
      _
    $region21: #{_mlp_call.1} parent=1 // pred_fallthru
      _
    // Predicated region
    $region22: #{_mlp_call.1} parent=1 // pred_check
      _
    $region23: #{_mlp_call.1} parent=1 // pred_check_branch
      %44 = sbr.rel (0) target = $region25
    $region24: #{_mlp_call.1} parent=1 // pred_region
      %45 = dma.done [#allocation4], 2048
    $region25: #{_mlp_call.1} parent=1 // pred_fallthru
      _
    // Predicated region
    $region26: #{_mlp_call.1} parent=1 // pred_check
      _
    $region27: #{_mlp_call.1} parent=1 // pred_check_branch
      %47 = sbr.rel (0) target = $region29
    $region28: #{_mlp_call.1} parent=1 // pred_region
      %48 = dma.done [#allocation7], 2048
    $region29: #{_mlp_call.1} parent=1 // pred_fallthru
      _
    %p49 = scmp.eq.s32.totalorder 0, 0
    // Predicated region
    $region30: #{_mlp_call.1} parent=1 // pred_check
      %p50 = pneg %p49
    $region31: #{_mlp_call.1} parent=1 // pred_check_branch
      %52 = sbr.rel (%p50) target = $region33
    $region32: #{_mlp_call.1} parent=1 // pred_region
      %53 = vst [vmem:[#allocation2] sm:$0xff] 0.0
    $region33: #{_mlp_call.1} parent=1 // pred_fallthru
      _
    %v54 = vld [vmem:[%s0] sm:$0xff]
    %v55 = vld [vmem:[#allocation3] sm:$0xff]
    %v56 = vld [vmem:[#allocation3 + $0x8] sm:$0xff]
    %v57 = vld [vmem:[#allocation3 + $0x10] sm:$0xff]
    %v58 = vld [vmem:[#allocation3 + $0x18] sm:$0xff]
    %v59 = vld [vmem:[#allocation3 + $0x20] sm:$0xff]
    %v60 = vld [vmem:[#allocation3 + $0x28] sm:$0xff]
    %v61 = vld [vmem:[#allocation3 + $0x30] sm:$0xff]
    %v62 = vld [vmem:[#allocation3 + $0x38] sm:$0xff]
    %v63 = vld [vmem:[#allocation3 + $0x40] sm:$0xff]
    %v64 = vld [vmem:[#allocation3 + $0x48] sm:$0xff]
    %v65 = vld [vmem:[#allocation3 + $0x50] sm:$0xff]
    %v66 = vld [vmem:[#allocation3 + $0x58] sm:$0xff]
    %v67 = vld [vmem:[#allocation3 + $0x60] sm:$0xff]
    %v68 = vld [vmem:[#allocation3 + $0x68] sm:$0xff]
    %v69 = vld [vmem:[#allocation3 + $0x70] sm:$0xff]
    %v70 = vld [vmem:[#allocation3 + $0x78] sm:$0xff]
    %v71 = vld [vmem:[%s2] sm:$0x1]
    %v73 = vlaneseq
    %v74 = vshrl.u32 %v73, 7
    %v75 = vsub.s32 0, %v74
    %v76 = vrot.slane %v71, %v75
    %78 = vmatprep.subr.mxu0 0.0
    %79 = vmatpush1.msra.mxu0 %v55
    %80 = vmatprep.subr.mxu0 0.0
    %81 = vmatpush1.msra.mxu0 %v56
    %82 = vmatprep.subr.mxu0 0.0
    %83 = vmatpush1.msra.mxu0 %v57
    %84 = vmatprep.subr.mxu0 0.0
    %85 = vmatpush1.msra.mxu0 %v58
    %86 = vmatprep.subr.mxu0 0.0
    %87 = vmatpush1.msra.mxu0 %v59
    %88 = vmatprep.subr.mxu0 0.0
    %89 = vmatpush1.msra.mxu0 %v60
    %90 = vmatprep.subr.mxu0 0.0
    %91 = vmatpush1.msra.mxu0 %v61
    %92 = vmatprep.subr.mxu0 0.0
    %93 = vmatpush1.msra.mxu0 %v62
    %94 = vmatprep.subr.mxu0 0.0
    %95 = vmatpush1.msra.mxu0 %v63
    %96 = vmatprep.subr.mxu0 0.0
    %97 = vmatpush1.msra.mxu0 %v64
    %98 = vmatprep.subr.mxu0 0.0
    %99 = vmatpush1.msra.mxu0 %v65
    %100 = vmatprep.subr.mxu0 0.0
    %101 = vmatpush1.msra.mxu0 %v66
    %102 = vmatprep.subr.mxu0 0.0
    %103 = vmatpush1.msra.mxu0 %v67
    %104 = vmatprep.subr.mxu0 0.0
    %105 = vmatpush1.msra.mxu0 %v68
    %106 = vmatprep.subr.mxu0 0.0
    %107 = vmatpush1.msra.mxu0 %v69
    %108 = vmatprep.subr.mxu0 0.0
    %109 = vmatpush1.msra.mxu0 %v70
    %110 = vmatprep.subr.mxu0 0.0
    %111 = vmatpush1.msra.mxu0 0.0
    %112 = vmatprep.subr.mxu0 0.0
    %113 = vmatpush1.msra.mxu0 0.0
    %114 = vmatprep.subr.mxu0 0.0
    %115 = vmatpush1.msra.mxu0 0.0
    %116 = vmatprep.subr.mxu0 0.0
    %117 = vmatpush1.msra.mxu0 0.0
    %118 = vmatprep.subr.mxu0 0.0
    %119 = vmatpush1.msra.mxu0 0.0
    %120 = vmatprep.subr.mxu0 0.0
    %121 = vmatpush1.msra.mxu0 0.0
    %122 = vmatprep.subr.mxu0 0.0
    %123 = vmatpush1.msra.mxu0 0.0
    %124 = vmatprep.subr.mxu0 0.0
    %125 = vmatpush1.msra.mxu0 0.0
    %126 = vmatprep.subr.mxu0 0.0
    %127 = vmatpush1.msra.mxu0 0.0
    %128 = vmatprep.subr.mxu0 0.0
    %129 = vmatpush1.msra.mxu0 0.0
    %130 = vmatprep.subr.mxu0 0.0
    %131 = vmatpush1.msra.mxu0 0.0
    %132 = vmatprep.subr.mxu0 0.0
    %133 = vmatpush1.msra.mxu0 0.0
    %134 = vmatprep.subr.mxu0 0.0
    %135 = vmatpush1.msra.mxu0 0.0
    %136 = vmatprep.subr.mxu0 0.0
    %137 = vmatpush1.msra.mxu0 0.0
    %138 = vmatprep.subr.mxu0 0.0
    %139 = vmatpush1.msra.mxu0 0.0
    %140 = vmatprep.subr.mxu0 0.0
    %141 = vmatpush1.msra.mxu0 0.0
    %142 = vmatprep.mubr.f32.mxu0 0.0
    %143 = vmatmul.mubr.f32.gmra.mrb[0].mxu0 %v54
    %v144 = vpop.f32.mrb[0].mxu0
    %v145 = vadd.f32 %v76, %v144
    %v146 = vpop.f32.mrb[0].mxu0
    %147 = vdwg.mxu0
    %v148 = vmax.f32 %v145, 0.0
    %v149 = vld [vmem:[#allocation2] sm:$0xff]
    %v150 = vld [vmem:[#allocation6] sm:$0xff]
    %v151 = vld [vmem:[#allocation6 + $0x8] sm:$0xff]
    %v152 = vld [vmem:[#allocation6 + $0x10] sm:$0xff]
    %v153 = vld [vmem:[#allocation6 + $0x18] sm:$0xff]
    %v154 = vld [vmem:[#allocation6 + $0x20] sm:$0xff]
    %v155 = vld [vmem:[#allocation6 + $0x28] sm:$0xff]
    %v156 = vld [vmem:[#allocation6 + $0x30] sm:$0xff]
    %v157 = vld [vmem:[#allocation6 + $0x38] sm:$0xff]
    %v158 = vld [vmem:[#allocation6 + $0x40] sm:$0xff]
    %v159 = vld [vmem:[#allocation6 + $0x48] sm:$0xff]
    %v160 = vld [vmem:[#allocation6 + $0x50] sm:$0xff]
    %v161 = vld [vmem:[#allocation6 + $0x58] sm:$0xff]
    %v162 = vld [vmem:[#allocation6 + $0x60] sm:$0xff]
    %v163 = vld [vmem:[#allocation6 + $0x68] sm:$0xff]
    %v164 = vld [vmem:[#allocation6 + $0x70] sm:$0xff]
    %v165 = vld [vmem:[#allocation6 + $0x78] sm:$0xff]
    %166 = vmatprep.subr.mxu0 0.0
    %167 = vmatpush1.msra.mxu0 %v150
    %168 = vmatprep.subr.mxu0 0.0
    %169 = vmatpush1.msra.mxu0 %v151
    %170 = vmatprep.subr.mxu0 0.0
    %171 = vmatpush1.msra.mxu0 %v152
    %172 = vmatprep.subr.mxu0 0.0
    %173 = vmatpush1.msra.mxu0 %v153
    %174 = vmatprep.subr.mxu0 0.0
    %175 = vmatpush1.msra.mxu0 %v154
    %176 = vmatprep.subr.mxu0 0.0
    %177 = vmatpush1.msra.mxu0 %v155
    %178 = vmatprep.subr.mxu0 0.0
    %179 = vmatpush1.msra.mxu0 %v156
    %180 = vmatprep.subr.mxu0 0.0
    %181 = vmatpush1.msra.mxu0 %v157
    %182 = vmatprep.subr.mxu0 0.0
    %183 = vmatpush1.msra.mxu0 %v158
    %184 = vmatprep.subr.mxu0 0.0
    %185 = vmatpush1.msra.mxu0 %v159
    %186 = vmatprep.subr.mxu0 0.0
    %187 = vmatpush1.msra.mxu0 %v160
    %188 = vmatprep.subr.mxu0 0.0
    %189 = vmatpush1.msra.mxu0 %v161
    %190 = vmatprep.subr.mxu0 0.0
    %191 = vmatpush1.msra.mxu0 %v162
    %192 = vmatprep.subr.mxu0 0.0
    %193 = vmatpush1.msra.mxu0 %v163
    %194 = vmatprep.subr.mxu0 0.0
    %195 = vmatpush1.msra.mxu0 %v164
    %196 = vmatprep.subr.mxu0 0.0
    %197 = vmatpush1.msra.mxu0 %v165
    %198 = vmatprep.subr.mxu0 0.0
    %199 = vmatpush1.msra.mxu0 0.0
    %200 = vmatprep.subr.mxu0 0.0
    %201 = vmatpush1.msra.mxu0 0.0
    %202 = vmatprep.subr.mxu0 0.0
    %203 = vmatpush1.msra.mxu0 0.0
    %204 = vmatprep.subr.mxu0 0.0
    %205 = vmatpush1.msra.mxu0 0.0
    %206 = vmatprep.subr.mxu0 0.0
    %207 = vmatpush1.msra.mxu0 0.0
    %208 = vmatprep.subr.mxu0 0.0
    %209 = vmatpush1.msra.mxu0 0.0
    %210 = vmatprep.subr.mxu0 0.0
    %211 = vmatpush1.msra.mxu0 0.0
    %212 = vmatprep.subr.mxu0 0.0
    %213 = vmatpush1.msra.mxu0 0.0
    %214 = vmatprep.subr.mxu0 0.0
    %215 = vmatpush1.msra.mxu0 0.0
    %216 = vmatprep.subr.mxu0 0.0
    %217 = vmatpush1.msra.mxu0 0.0
    %218 = vmatprep.subr.mxu0 0.0
    %219 = vmatpush1.msra.mxu0 0.0
    %220 = vmatprep.subr.mxu0 0.0
    %221 = vmatpush1.msra.mxu0 0.0
    %222 = vmatprep.subr.mxu0 0.0
    %223 = vmatpush1.msra.mxu0 0.0
    %224 = vmatprep.subr.mxu0 0.0
    %225 = vmatpush1.msra.mxu0 0.0
    %226 = vmatprep.subr.mxu0 0.0
    %227 = vmatpush1.msra.mxu0 0.0
    %228 = vmatprep.subr.mxu0 0.0
    %229 = vmatpush1.msra.mxu0 0.0
    %230 = vmatprep.mubr.f32.mxu0 0.0
    %231 = vmatmul.mubr.f32.gmra.mrb[0].mxu0 %v148
    %v232 = vpop.f32.mrb[0].mxu0
    %v233 = vadd.f32 0.0, %v232
    %v234 = vpop.f32.mrb[0].mxu0
    %235 = vdwg.mxu0
    %v236 = vadd.f32 %v149, %v233
    %237 = vst [vmem:[#allocation2] sm:$0xff] %v236
    // Predicated region
    $region34: #{_mlp_call.1} parent=1 // pred_check
      %p238 = pneg %p49
    $region35: #{_mlp_call.1} parent=1 // pred_check_branch
      %240 = sbr.rel (%p238) target = $region37
    $region36: #{_mlp_call.1} parent=1 // pred_region
      %v241 = vld [vmem:[#allocation2] sm:$0xff]
      %v242 = vld [vmem:[%s4] sm:$0x1]
      %v244 = vlaneseq
      %v245 = vshrl.u32 %v244, 7
      %v246 = vsub.s32 0, %v245
      %v247 = vrot.slane %v242, %v246
      %v249 = vadd.f32 %v241, %v247
      %250 = vst [vmem:[#allocation8] sm:$0xff] %v249
    $region37: #{_mlp_call.1} parent=1 // pred_fallthru
      _
    // Predicated region
    $region38: #{_mlp_call.1} parent=1 // pred_check
      _
    $region39: #{_mlp_call.1} parent=1 // pred_check_branch
      %252 = sbr.rel (0) target = $region41
    $region40: #{_mlp_call.1} parent=1 // pred_region
      %s254 = ssub.s32 128, 128
      %255 = vsyncadd [#allocation5], %s254
      %s257 = sshll.u32 [#allocation8], 4
      %s258 = int_to_ptr.vmem [resolvable:$true] %s257
      %260 = dma.vmem_to_hbm [thread:$0]  %s258, 128, %s5, [#allocation5]
    $region41: #{_mlp_call.1} parent=1 // pred_fallthru
      _
    // Predicated region
    $region42: #{_mlp_call.1} parent=1 // pred_check
      _
    $region43: #{_mlp_call.1} parent=1 // pred_check_branch
      %262 = sbr.rel (0) target = $region45
    $region44: #{_mlp_call.1} parent=1 // pred_region
      %263 = dma.done [#allocation5], 128
    $region45: #{_mlp_call.1} parent=1 // pred_fallthru
      _
    %264 = vsyncpa [#allocation4], 1
    %265 = vsyncpa [#allocation7], 1
    %266 = vsyncpa [#allocation5], 1

</llo_original>
